<compile_context>
chip_gen: v5e
topology: v5e:2x2
jax: 0.10.0
libtpu: 0.0.40
codegen_flags: <defaults>
</compile_context>

<pallas_src>
import math
import jax
import jax.numpy as jnp
from jax.experimental import pallas as pl
from jax.experimental.pallas import tpu as pltpu


def _sepconv_kernel(x_ref, band_ref, bias_ref, o_ref):
    """One grid step processes IMGS images of the flattened T*B batch.

    x_ref   : (IMGS, H, W*C_in)      input rows (NHWC rows, channels innermost)
    band_ref: (3, W*C_in, W*C_out)   fused banded depthwise+pointwise weights
    bias_ref: (1, W*C_out)           fused bias tiled over x
    o_ref   : (IMGS*H, W*C_out)      lane-dense output rows
    """
    IMGS, H, WC_in = x_ref.shape
    M, WC_out = o_ref.shape            # M = IMGS * H

    # Flatten (images, rows) onto the sublane axis; H is a multiple of 8 at the
    # shapes used, so this reshape is layout-preserving.
    x = x_ref[...].reshape(M, WC_in)

    # One MXU matmul per dy tap of the 3x3 kernel.  The dx taps, the pointwise
    # 1x1 conv and the x zero-padding are already folded into band_ref.
    p0 = jnp.dot(x, band_ref[0], preferred_element_type=jnp.float32)
    p1 = jnp.dot(x, band_ref[1], preferred_element_type=jnp.float32)
    p2 = jnp.dot(x, band_ref[2], preferred_element_type=jnp.float32)

    # dy = 0 reads input row y-1, dy = 2 reads row y+1: realize the y shift
    # with sublane rolls (XLU) and mask the per-image boundary rows, which
    # also implements the y-direction zero padding.
    row = jax.lax.broadcasted_iota(jnp.int32, (M, WC_out), 0) % H
    up = pltpu.roll(p0, shift=1, axis=0)        # up[m] = p0[m-1]
    dn = pltpu.roll(p2, shift=M - 1, axis=0)    # dn[m] = p2[m+1]

    out = p1 + bias_ref[...]
    out = out + jnp.where(row != 0, up, 0.0)
    out = out + jnp.where(row != H - 1, dn, 0.0)

    o_ref[...] = out.astype(o_ref.dtype)


def synapse_separable_conv_bptt(x, w_dw, b_dw, w_pw, b_pw):
    """x: (T, B, C_in, H, W) float32.  Returns (T, B, C_out, H, W).

    w_dw: (C_in, 1, 3, 3), b_dw: (C_in,), w_pw: (C_out, C_in, 1, 1), b_pw: (C_out,)
    Assumes kernel_size=3, stride=1, padding=1 (the module's defaults).
    """
    T, B, C_in, H, W = x.shape
    C_out = w_pw.shape[0]
    TB = T * B

    # ---- layout: NCHW -> NHWC rows, (TB, H, W*C_in). One XLA transpose. ----
    x_rows = jnp.transpose(x.reshape(TB, C_in, H, W), (0, 2, 3, 1))
    x_rows = x_rows.reshape(TB, H, W * C_in)

    # ---- fuse depthwise + pointwise into banded weights (trace-time prep) ----
    # Wf[dy, dx, c, o] = w_dw[c, dy, dx] * w_pw[o, c]
    wdw = w_dw.reshape(C_in, 3, 3).astype(jnp.float32)
    wpw = w_pw.reshape(C_out, C_in).astype(jnp.float32)
    wf = jnp.einsum('cyx,oc->yxco', wdw, wpw)            # (3, 3, C_in, C_out)

    bands = []
    for dy in range(3):
        b_dy = jnp.zeros((W * C_in, W * C_out), jnp.float32)
        for dx in range(3):
            # ones where (input col xi) == (output col x) + dx - 1; out-of-range
            # entries simply don't exist -> x-direction zero padding for free.
            shift = jnp.eye(W, k=1 - dx, dtype=jnp.float32)
            b_dy = b_dy + jnp.kron(shift, wf[dy, dx])
        bands.append(b_dy)
    band = jnp.stack(bands)                              # (3, W*C_in, W*C_out)

    # Fold the depthwise bias through the pointwise conv: bf = b_pw + W_pw @ b_dw.
    bias_fused = b_pw.astype(jnp.float32) + wpw @ b_dw.astype(jnp.float32)
    bias_row = jnp.tile(bias_fused, W).reshape(1, W * C_out)

    # ---- grid: a few large blocks (>= 2 so v7x megacore can split them) ----
    nblk = 2 if TB % 2 == 0 else 1
    imgs = TB // nblk

    flops = 2 * 3 * (TB * H) * (W * C_in) * (W * C_out)
    bytes_accessed = 4 * (TB * H * W * C_in + TB * H * W * C_out
                          + band.size + bias_row.size)

    out_rows = pl.pallas_call(
        _sepconv_kernel,
        out_shape=jax.ShapeDtypeStruct((TB * H, W * C_out), x.dtype),
        grid_spec=pltpu.PrefetchScalarGridSpec(
            num_scalar_prefetch=0,
            grid=(nblk,),
            in_specs=[
                pl.BlockSpec((imgs, H, W * C_in), lambda n: (n, 0, 0)),
                pl.BlockSpec((3, W * C_in, W * C_out), lambda n: (0, 0, 0)),
                pl.BlockSpec((1, W * C_out), lambda n: (0, 0)),
            ],
            out_specs=pl.BlockSpec((imgs * H, W * C_out), lambda n: (n, 0)),
        ),
        compiler_params=pltpu.CompilerParams(
            dimension_semantics=("parallel",)),
        cost_estimate=pl.CostEstimate(flops=flops, transcendentals=0,
                                      bytes_accessed=bytes_accessed),
    )(x_rows, band, bias_row)

    # (TB*H, W*C_out) -> (T, B, C_out, H, W)
    out = out_rows.reshape(TB, H, W, C_out)
    out = jnp.transpose(out, (0, 3, 1, 2)).reshape(T, B, C_out, H, W)
    return out


def _reference(x, w_dw, b_dw, w_pw, b_pw):
    """Plain-JAX reference using lax.conv, same semantics as PyTorch."""
    T, B, C_in, H, W = x.shape
    C_out = w_pw.shape[0]
    xr = x.reshape(T * B, C_in, H, W)
    dw = jax.lax.conv_general_dilated(
        xr, w_dw, window_strides=(1, 1), padding=((1, 1), (1, 1)),
        dimension_numbers=("NCHW", "OIHW", "NCHW"),
        feature_group_count=C_in)
    dw = dw + b_dw[None, :, None, None]
    pw = jax.lax.conv_general_dilated(
        dw, w_pw, window_strides=(1, 1), padding="VALID",
        dimension_numbers=("NCHW", "OIHW", "NCHW"))
    pw = pw + b_pw[None, :, None, None]
    return pw.reshape(T, B, C_out, H, W)


if __name__ == "__main__":
    # Small deterministic setup consistent with the module's forward (TIME=8).
    T, B, C_in, C_out, H, W = 8, 2, 4, 8, 16, 16
    key = jax.random.PRNGKey(0)
    kx, kdw, kpw = jax.random.split(key, 3)

    x = jax.random.normal(kx, (T, B, C_in, H, W), dtype=jnp.float32)

    # __init__ init: normal(0, sqrt(2/n)) weights, zero bias.
    n_dw = 3 * 3 * C_in          # kernel_size^2 * conv_depthwise.out_channels
    n_pw = 1 * 1 * C_out         # kernel_size^2 * conv_pointwise.out_channels
    w_dw = jax.random.normal(kdw, (C_in, 1, 3, 3), jnp.float32) * math.sqrt(2.0 / n_dw)
    b_dw = jnp.zeros((C_in,), jnp.float32)
    w_pw = jax.random.normal(kpw, (C_out, C_in, 1, 1), jnp.float32) * math.sqrt(2.0 / n_pw)
    b_pw = jnp.zeros((C_out,), jnp.float32)

    out = synapse_separable_conv_bptt(x, w_dw, b_dw, w_pw, b_pw)
    out = jax.block_until_ready(out)

    ref = _reference(x, w_dw, b_dw, w_pw, b_pw)
    assert out.shape == (T, B, C_out, H, W)
    assert jnp.allclose(out, ref, rtol=1e-4, atol=1e-4), "mismatch vs reference"

    print("KERNEL_OK")
</pallas_src>

<mosaic_0001>
module attributes {stable_mosaic.version = 11 : i64} {
  func.func @_sepconv_kernel(%arg0: i32, %arg1: memref<8x16x64xf32, #tpu.memory_space<vmem>>, %arg2: memref<3x64x128xf32, #tpu.memory_space<vmem>>, %arg3: memref<1x128xf32, #tpu.memory_space<vmem>>, %arg4: memref<128x128xf32, #tpu.memory_space<vmem>>) attributes {dimension_semantics = [#tpu.dimension_semantics<parallel>], iteration_bounds = array<i64: 2>, scalar_prefetch = 0 : i64, scratch_operands = 0 : i64, tpu.core_type = #tpu.core_type<tc>, window_params = [{transform_indices = @transform_0, window_bounds = array<i64: 8, 16, 64>}, {pipeline_mode = #tpu.pipeline_mode<synchronous>, transform_indices = @transform_1, window_bounds = array<i64: 3, 64, 128>}, {pipeline_mode = #tpu.pipeline_mode<synchronous>, transform_indices = @transform_2, window_bounds = array<i64: 1, 128>}, {transform_indices = @transform_3, window_bounds = array<i64: 128, 128>}]} {
    %c0 = arith.constant 0 : index
    %c0_0 = arith.constant 0 : index
    %c0_1 = arith.constant 0 : index
    %0 = vector.load %arg1[%c0, %c0_0, %c0_1] : memref<8x16x64xf32, #tpu.memory_space<vmem>>, vector<8x16x64xf32>
    %1 = vector.shape_cast %0 : vector<8x16x64xf32> to vector<128x64xf32>
    %c0_2 = arith.constant 0 : index
    %c0_3 = arith.constant 0 : index
    %c0_4 = arith.constant 0 : index
    %2 = vector.load %arg2[%c0_2, %c0_3, %c0_4] : memref<3x64x128xf32, #tpu.memory_space<vmem>>, vector<1x64x128xf32>
    %3 = vector.shape_cast %2 : vector<1x64x128xf32> to vector<64x128xf32>
    %cst = arith.constant dense<0.000000e+00> : vector<128x128xf32>
    %4 = tpu.matmul %1, %3, %cst {dimension_numbers = #tpu.dot_dimension_numbers<[1], [0], [0], [1], [0, 0, 1, 1], [], []>} : vector<128x64xf32>, vector<64x128xf32>, vector<128x128xf32> -> vector<128x128xf32>
    %c1 = arith.constant 1 : index
    %c0_5 = arith.constant 0 : index
    %c0_6 = arith.constant 0 : index
    %5 = vector.load %arg2[%c1, %c0_5, %c0_6] : memref<3x64x128xf32, #tpu.memory_space<vmem>>, vector<1x64x128xf32>
    %6 = vector.shape_cast %5 : vector<1x64x128xf32> to vector<64x128xf32>
    %cst_7 = arith.constant dense<0.000000e+00> : vector<128x128xf32>
    %7 = tpu.matmul %1, %6, %cst_7 {dimension_numbers = #tpu.dot_dimension_numbers<[1], [0], [0], [1], [0, 0, 1, 1], [], []>} : vector<128x64xf32>, vector<64x128xf32>, vector<128x128xf32> -> vector<128x128xf32>
    %c2 = arith.constant 2 : index
    %c0_8 = arith.constant 0 : index
    %c0_9 = arith.constant 0 : index
    %8 = vector.load %arg2[%c2, %c0_8, %c0_9] : memref<3x64x128xf32, #tpu.memory_space<vmem>>, vector<1x64x128xf32>
    %9 = vector.shape_cast %8 : vector<1x64x128xf32> to vector<64x128xf32>
    %cst_10 = arith.constant dense<0.000000e+00> : vector<128x128xf32>
    %10 = tpu.matmul %1, %9, %cst_10 {dimension_numbers = #tpu.dot_dimension_numbers<[1], [0], [0], [1], [0, 0, 1, 1], [], []>} : vector<128x64xf32>, vector<64x128xf32>, vector<128x128xf32> -> vector<128x128xf32>
    %11 = tpu.iota {dimensions = array<i32: 0>} : vector<128x128xi32>
    %c16_i32 = arith.constant 16 : i32
    %c0_i32 = arith.constant 0 : i32
    %12 = arith.cmpi eq, %c16_i32, %c0_i32 : i32
    %c1_i32 = arith.constant 1 : i32
    %13 = arith.select %12, %c1_i32, %c16_i32 : i32
    %14 = vector.broadcast %13 : i32 to vector<128x128xi32>
    %15 = arith.remsi %11, %14 : vector<128x128xi32>
    %c0_i32_11 = arith.constant 0 : i32
    %16 = vector.broadcast %c0_i32_11 : i32 to vector<128x128xi32>
    %17 = arith.cmpi ne, %15, %16 : vector<128x128xi32>
    %c0_i32_12 = arith.constant 0 : i32
    %18 = vector.broadcast %c0_i32_12 : i32 to vector<128x128xi32>
    %19 = arith.cmpi slt, %15, %18 : vector<128x128xi32>
    %c0_i32_13 = arith.constant 0 : i32
    %20 = arith.cmpi slt, %13, %c0_i32_13 : i32
    %21 = vector.broadcast %20 : i1 to vector<128x128xi1>
    %22 = vector.broadcast %21 : vector<128x128xi1> to vector<128x128xi1>
    %23 = arith.xori %19, %22 : vector<128x128xi1>
    %24 = arith.andi %23, %17 : vector<128x128xi1>
    %25 = vector.broadcast %13 : i32 to vector<128x128xi32>
    %26 = arith.addi %15, %25 : vector<128x128xi32>
    %27 = arith.select %24, %26, %15 : vector<128x128xi1>, vector<128x128xi32>
    %c1_i32_14 = arith.constant 1 : i32
    %28 = tpu.dynamic_rotate %4 by %c1_i32_14 dim 0 : vector<128x128xf32>, i32 -> vector<128x128xf32>
    %c127_i32 = arith.constant 127 : i32
    %29 = tpu.dynamic_rotate %10 by %c127_i32 dim 0 : vector<128x128xf32>, i32 -> vector<128x128xf32>
    %c0_15 = arith.constant 0 : index
    %c0_16 = arith.constant 0 : index
    %30 = vector.load %arg3[%c0_15, %c0_16] : memref<1x128xf32, #tpu.memory_space<vmem>>, vector<1x128xf32>
    %31 = vector.broadcast %30 : vector<1x128xf32> to vector<128x128xf32>
    %32 = arith.addf %7, %31 : vector<128x128xf32>
    %c0_i32_17 = arith.constant 0 : i32
    %33 = vector.broadcast %c0_i32_17 : i32 to vector<128x128xi32>
    %34 = arith.cmpi ne, %27, %33 : vector<128x128xi32>
    %cst_18 = arith.constant 0.000000e+00 : f32
    %35 = vector.broadcast %cst_18 : f32 to vector<128x128xf32>
    %36 = arith.select %34, %28, %35 : vector<128x128xi1>, vector<128x128xf32>
    %37 = arith.addf %32, %36 : vector<128x128xf32>
    %c15_i32 = arith.constant 15 : i32
    %38 = vector.broadcast %c15_i32 : i32 to vector<128x128xi32>
    %39 = arith.cmpi ne, %27, %38 : vector<128x128xi32>
    %cst_19 = arith.constant 0.000000e+00 : f32
    %40 = vector.broadcast %cst_19 : f32 to vector<128x128xf32>
    %41 = arith.select %39, %29, %40 : vector<128x128xi1>, vector<128x128xf32>
    %42 = arith.addf %37, %41 : vector<128x128xf32>
    %c0_20 = arith.constant 0 : index
    %c0_21 = arith.constant 0 : index
    %43 = vector.load %arg4[%c0_20, %c0_21] : memref<128x128xf32, #tpu.memory_space<vmem>>, vector<128x128xf32>
    tpu.vector_store %arg4[%c0_20, %c0_21], %42 {strides = array<i32>} : memref<128x128xf32, #tpu.memory_space<vmem>>, vector<128x128xf32>,
    return
  }
  func.func @transform_0(%arg0: i32) -> (i32, i32, i32) {
    %c0_i32 = arith.constant 0 : i32
    %c0_i32_0 = arith.constant 0 : i32
    %c0_i32_1 = arith.constant 0 : i32
    return %arg0, %c0_i32, %c0_i32_0 : i32, i32, i32
  }
  func.func @transform_1(%arg0: i32) -> (i32, i32, i32) {
    %c0_i32 = arith.constant 0 : i32
    %c0_i32_0 = arith.constant 0 : i32
    %c0_i32_1 = arith.constant 0 : i32
    %c0_i32_2 = arith.constant 0 : i32
    return %c0_i32, %c0_i32_0, %c0_i32_1 : i32, i32, i32
  }
  func.func @transform_2(%arg0: i32) -> (i32, i32) {
    %c0_i32 = arith.constant 0 : i32
    %c0_i32_0 = arith.constant 0 : i32
    %c0_i32_1 = arith.constant 0 : i32
    return %c0_i32, %c0_i32_0 : i32, i32
  }
  func.func @transform_3(%arg0: i32) -> (i32, i32) {
    %c0_i32 = arith.constant 0 : i32
    %c0_i32_0 = arith.constant 0 : i32
    return %arg0, %c0_i32 : i32, i32
  }
}

</mosaic_0001>

<llo_original>
// kernel: tpu_custom_call.1
$region0: #{tpu_custom_call.1}
  #allocation0 [shape = 'u32[]', space=smem, size = 0x4, offset = 0x4, fixed_abs, tag = 'smem constant byte address 0x4 - core index']
  #allocation1 [shape = 'u32[72,128]{1,0:T(1,128)}', space=vmem, size = 0x9000, scoped, tag = 'internal scratch']
  %s0 = inlined_call_operand.hbm [shape: f32[16,16,64], index: 0, kind: input, shape index: {}]
  %s1 = inlined_call_operand.hbm [shape: f32[3,64,128], index: 1, kind: input, shape index: {}]
  %s2 = inlined_call_operand.vmem [shape: f32[1,128], index: 2, kind: input, shape index: {}]
  %s3 = inlined_call_operand.hbm [shape: f32[256,128], index: 3, kind: output, shape index: {}]
  %s4 = sld [smem:[#allocation0]]
  $region53: #{tpu_custom_call.1} parent=0
    _
  %s6 = ssub.s32 1, %s4
  %s7 = scalar_select 0, %s6, %s4
  $region1: #{tpu_custom_call.1} parent=0
    #allocation2 [shape = 'u8[131072]{0}', space=vmem, size = 0x20000, scoped, tag = 'input window, operand 0']
    #allocation3 [shape = 's32[2]{0}', space=sflag, size = 0x8, scoped, tag = 'scoped memory for tpu_custom_call.1']
    #allocation4 [shape = 's32[2]{0}', space=sflag, size = 0x8, scoped, tag = 'scoped memory for tpu_custom_call.1']
    #allocation5 [shape = 'u8[98304]{0}', space=vmem, size = 0x18000, scoped, tag = 'input window, operand 1, single buffered']
    #allocation6 [shape = 's32[1]{0}', space=sflag, size = 0x4, scoped, tag = 'scoped memory for tpu_custom_call.1']
    #allocation7 [shape = 'u8[131072]{0}', space=vmem, size = 0x20000, scoped, tag = 'output window, operand 0']
    %8 = vsyncpa [#allocation3], 0
    %s9 = scalar_lea.sflag [#allocation3], 1
    %10 = vsyncpa %s9, 0
    %11 = vsyncpa [#allocation6], 0
    %12 = vsyncpa [#allocation4], 0
    %s13 = scalar_lea.sflag [#allocation4], 1
    %14 = vsyncpa %s13, 0
    loop: start=0, step=1, limit=4
    $region2: #{tpu_custom_call.1} parent=1 // loop_pre_header
      _
    $region3: #{tpu_custom_call.1} parent=1 // loop_header
      %s16 = sphi 0, %s20
      %p17 = scmp.ge.s32.totalorder %s16, 4
      %s26 = sphi 0, %s28
      %s29 = sphi 0, %s26
      %s30 = sphi 0, %s29
      %s46 = sphi 0, %s30
      %s50 = sphi 0, %s50
      %s52 = sphi 0, %s50
      %s53 = sphi 0, %s52
      %s67 = sphi 0, %s53
      %s71 = sphi 0, %s71
      %s73 = sphi 0, %s71
      %s74 = sphi 0, %s73
      %s88 = sphi 0, %s74
      %s94 = sphi 0, %s96
      %s97 = sphi 0, %s94
      %s98 = sphi 0, %s97
      %s114 = sphi 0, %s98
    $region4: #{tpu_custom_call.1} parent=1 // loop_header_branch
      %19 = sbr.rel (%p17) target = $region8
    $region5: #{tpu_custom_call.1} parent=1 // loop_body
      %s21 = ssub.s32 %s16, 1
      %s22 = ssub.s32 %s16, 2
      %s23 = sadd.s32 %s16, 1
      %s24 = ssub.s32 %s16, %s23
      %p25 = scmp.eq.s32.totalorder %s24, 0
      %s27 = sadd.s32 %s26, 1
      %s28 = scalar_select %p25, %s26, %s27
      %p31 = pneg %p25
      %p32 = scmp.eq.s32.totalorder %s16, 1
      %p33 = por %p31, %p32
      %p34 = scmp.ne.s32.totalorder %s26, %s29
      %p35 = scmp.eq.s32.totalorder %s16, 0
      %p36 = por %p34, %p35
      %p37 = scmp.ne.s32.totalorder %s26, %s29
      %p38 = scmp.eq.s32.totalorder %s21, 1
      %p39 = por %p37, %p38
      %p40 = scmp.ne.s32.totalorder %s29, %s30
      %p41 = scmp.eq.s32.totalorder %s21, 0
      %p42 = por %p40, %p41
      %p43 = scmp.ne.s32.totalorder %s29, %s30
      %p44 = scmp.eq.s32.totalorder %s22, 1
      %p45 = por %p43, %p44
      %p47 = scmp.ne.s32.totalorder %s30, %s46
      %p48 = scmp.eq.s32.totalorder %s22, 0
      %p49 = por %p47, %p48
      %s51 = sadd.s32 %s50, 1
      %p54 = scmp.eq.s32.totalorder %s16, 1
      %p55 = scmp.ne.s32.totalorder %s50, %s52
      %p56 = scmp.eq.s32.totalorder %s16, 0
      %p57 = por %p55, %p56
      %p58 = scmp.ne.s32.totalorder %s50, %s52
      %p59 = scmp.eq.s32.totalorder %s21, 1
      %p60 = por %p58, %p59
      %p61 = scmp.ne.s32.totalorder %s52, %s53
      %p62 = scmp.eq.s32.totalorder %s21, 0
      %p63 = por %p61, %p62
      %p64 = scmp.ne.s32.totalorder %s52, %s53
      %p65 = scmp.eq.s32.totalorder %s22, 1
      %p66 = por %p64, %p65
      %p68 = scmp.ne.s32.totalorder %s53, %s67
      %p69 = scmp.eq.s32.totalorder %s22, 0
      %p70 = por %p68, %p69
      %s72 = sadd.s32 %s71, 1
      %p75 = scmp.eq.s32.totalorder %s16, 1
      %p76 = scmp.ne.s32.totalorder %s71, %s73
      %p77 = scmp.eq.s32.totalorder %s16, 0
      %p78 = por %p76, %p77
      %p79 = scmp.ne.s32.totalorder %s71, %s73
      %p80 = scmp.eq.s32.totalorder %s21, 1
      %p81 = por %p79, %p80
      %p82 = scmp.ne.s32.totalorder %s73, %s74
      %p83 = scmp.eq.s32.totalorder %s21, 0
      %p84 = por %p82, %p83
      %p85 = scmp.ne.s32.totalorder %s73, %s74
      %p86 = scmp.eq.s32.totalorder %s22, 1
      %p87 = por %p85, %p86
      %p89 = scmp.ne.s32.totalorder %s74, %s88
      %p90 = scmp.eq.s32.totalorder %s22, 0
      %p91 = por %p89, %p90
      %s92 = ssub.s32 %s16, %s23
      %p93 = scmp.eq.s32.totalorder %s92, 0
      %s95 = sadd.s32 %s94, 1
      %s96 = scalar_select %p93, %s94, %s95
      %p99 = pneg %p93
      %p100 = scmp.eq.s32.totalorder %s16, 1
      %p101 = por %p99, %p100
      %p102 = scmp.ne.s32.totalorder %s94, %s97
      %p103 = scmp.eq.s32.totalorder %s16, 0
      %p104 = por %p102, %p103
      %p105 = scmp.ne.s32.totalorder %s94, %s97
      %p106 = scmp.eq.s32.totalorder %s21, 1
      %p107 = por %p105, %p106
      %p108 = scmp.ne.s32.totalorder %s97, %s98
      %p109 = scmp.eq.s32.totalorder %s21, 0
      %p110 = por %p108, %p109
      %p111 = scmp.ne.s32.totalorder %s97, %s98
      %p112 = scmp.eq.s32.totalorder %s22, 1
      %p113 = por %p111, %p112
      %p115 = scmp.ne.s32.totalorder %s98, %s114
      %p116 = scmp.eq.s32.totalorder %s22, 0
      %p117 = por %p115, %p116
      %p118 = scmp.le.s32.totalorder 1, %s16
      %p119 = scmp.lt.s32.totalorder %s16, 3
      %p120 = pnand %p118, %p119
      %p121 = pneg %p120
      // Predicated region
      $region9: #{tpu_custom_call.1} parent=5 // pred_check
        _
      $region10: #{tpu_custom_call.1} parent=5 // pred_check_branch
        %123 = sbr.rel (%p120) target = $region12
      $region11: #{tpu_custom_call.1} parent=5 // pred_region
        %s124 = ssub.s32 %s16, 1
        // Predicated region
        $region13: #{tpu_custom_call.1} parent=11 // pred_check
          %p125 = pneg %p63
        $region14: #{tpu_custom_call.1} parent=11 // pred_check_branch
          %127 = sbr.rel (%p125) target = $region16
        $region15: #{tpu_custom_call.1} parent=11 // pred_region
          %129 = vsyncadd [#allocation6], 0
          %s130 = sshll.u32 %s1, 4
          %s131 = int_to_ptr.hbm [resolvable:$true] %s130
          %s132 = sshll.u32 [#allocation5], 4
          %s133 = int_to_ptr.vmem [resolvable:$true] %s132
          %138 = dma.hbm_to_vmem [thread:$0]  %s131, 3072, %s133, [#allocation6], 128, 128, 8
        $region16: #{tpu_custom_call.1} parent=11 // pred_fallthru
          _
        // Predicated region
        $region17: #{tpu_custom_call.1} parent=11 // pred_check
          %p139 = pneg %p84
        $region18: #{tpu_custom_call.1} parent=11 // pred_check_branch
          %141 = sbr.rel (%p139) target = $region20
        $region19: #{tpu_custom_call.1} parent=11 // pred_region
          _
        $region20: #{tpu_custom_call.1} parent=11 // pred_fallthru
          _
      $region12: #{tpu_custom_call.1} parent=5 // pred_fallthru
        _
      %p142 = scmp.lt.s32.totalorder %s16, 2
      // Predicated region
      $region21: #{tpu_custom_call.1} parent=5 // pred_check
        %p143 = pneg %p142
      $region22: #{tpu_custom_call.1} parent=5 // pred_check_branch
        %145 = sbr.rel (%p143) target = $region24
      $region23: #{tpu_custom_call.1} parent=5 // pred_region
        // Predicated region
        $region25: #{tpu_custom_call.1} parent=23 // pred_check
          %p146 = pneg %p36
        $region26: #{tpu_custom_call.1} parent=23 // pred_check_branch
          %148 = sbr.rel (%p146) target = $region28
        $region27: #{tpu_custom_call.1} parent=23 // pred_region
          %s149 = sand.u32 %s26, 1
          %s150 = scalar_lea.sflag [#allocation3], %s149
          %s151 = sand.u32 %s26, 1
          %s152 = smul.addr %s151, 128
          %s153 = scalar_lea.vmem [#allocation2], %s152
          %s154 = smul.u32 8, %s16
          %156 = vsyncadd %s150, 0
          %s157 = smul.addr %s154, 2
          %s158 = smul.addr %s157, 8
          %s159 = scalar_lea.hbm %s0, %s158
          %s160 = sshll.u32 %s159, 4
          %s161 = int_to_ptr.hbm [resolvable:$true] %s160
          %s162 = sshll.u32 %s153, 4
          %s163 = int_to_ptr.vmem [resolvable:$true] %s162
          %168 = dma.hbm_to_vmem [thread:$0]  %s161, 2048, %s163, %s150, 128, 128, 8
        $region28: #{tpu_custom_call.1} parent=23 // pred_fallthru
          _
      $region24: #{tpu_custom_call.1} parent=5 // pred_fallthru
        _
      %p169 = scmp.le.s32.totalorder 1, %s16
      %p170 = scmp.lt.s32.totalorder %s16, 3
      %p171 = pnand %p169, %p170
      %p172 = pneg %p171
      // Predicated region
      $region29: #{tpu_custom_call.1} parent=5 // pred_check
        _
      $region30: #{tpu_custom_call.1} parent=5 // pred_check_branch
        %174 = sbr.rel (%p171) target = $region32
      $region31: #{tpu_custom_call.1} parent=5 // pred_region
        %s175 = ssub.s32 %s16, 1
        %s176 = sand.u32 %s29, 1
        %s177 = scalar_lea.sflag [#allocation3], %s176
        %s178 = sand.u32 %s29, 1
        %s179 = smul.addr %s178, 128
        %s180 = scalar_lea.vmem [#allocation2], %s179
        // Predicated region
        $region33: #{tpu_custom_call.1} parent=31 // pred_check
          %p181 = pneg %p42
        $region34: #{tpu_custom_call.1} parent=31 // pred_check_branch
          %183 = sbr.rel (%p181) target = $region36
        $region35: #{tpu_custom_call.1} parent=31 // pred_region
          %185 = dma.done %s177, 2048
        $region36: #{tpu_custom_call.1} parent=31 // pred_fallthru
          _
        // Predicated region
        $region37: #{tpu_custom_call.1} parent=31 // pred_check
          %p186 = pneg %p63
        $region38: #{tpu_custom_call.1} parent=31 // pred_check_branch
          %188 = sbr.rel (%p186) target = $region40
        $region39: #{tpu_custom_call.1} parent=31 // pred_region
          %190 = dma.done [#allocation6], 3072
        $region40: #{tpu_custom_call.1} parent=31 // pred_fallthru
          _
        %s191 = sand.u32 %s29, 1
        %s192 = scalar_lea.sflag [#allocation3], %s191
        %s193 = sand.u32 %s29, 1
        %s194 = smul.addr %s193, 128
        %s195 = scalar_lea.vmem [#allocation2], %s194
        %p196 = pneg %p42
        %p197 = pneg %p39
        %p198 = pneg %p63
        %p199 = pneg %p60
        %p200 = pneg %p84
        %p201 = pneg %p81
        %p202 = pneg %p110
        %p203 = pneg %p107
        %s204 = sand.u32 %s97, 1
        %s205 = scalar_lea.sflag [#allocation4], %s204
        %s206 = sand.u32 %s97, 1
        %s207 = smul.addr %s206, 128
        %s208 = scalar_lea.vmem [#allocation7], %s207
        %s209 = smul.u32 8, %s21
        %s210 = smul.u32 16, %s21
        %v211 = vld [vmem:[%s180] sm:$0xff]
        %v212 = vld [vmem:[%s180 + $0x8] sm:$0xff]
        %v213 = vld [vmem:[%s180 + $0x10] sm:$0xff]
        %v214 = vld [vmem:[%s180 + $0x18] sm:$0xff]
        %v215 = vld [vmem:[%s180 + $0x20] sm:$0xff]
        %v216 = vld [vmem:[%s180 + $0x28] sm:$0xff]
        %v217 = vld [vmem:[%s180 + $0x30] sm:$0xff]
        %v218 = vld [vmem:[%s180 + $0x38] sm:$0xff]
        %v219 = vld [vmem:[%s180 + $0x40] sm:$0xff]
        %v220 = vld [vmem:[%s180 + $0x48] sm:$0xff]
        %v221 = vld [vmem:[%s180 + $0x50] sm:$0xff]
        %v222 = vld [vmem:[%s180 + $0x58] sm:$0xff]
        %v223 = vld [vmem:[%s180 + $0x60] sm:$0xff]
        %v224 = vld [vmem:[%s180 + $0x68] sm:$0xff]
        %v225 = vld [vmem:[%s180 + $0x70] sm:$0xff]
        %v226 = vld [vmem:[%s180 + $0x78] sm:$0xff]
        %v227 = vld [vmem:[#allocation5] sm:$0xff]
        %v228 = vld [vmem:[#allocation5 + $0x8] sm:$0xff]
        %v229 = vld [vmem:[#allocation5 + $0x10] sm:$0xff]
        %v230 = vld [vmem:[#allocation5 + $0x18] sm:$0xff]
        %v231 = vld [vmem:[#allocation5 + $0x20] sm:$0xff]
        %v232 = vld [vmem:[#allocation5 + $0x28] sm:$0xff]
        %v233 = vld [vmem:[#allocation5 + $0x30] sm:$0xff]
        %v234 = vld [vmem:[#allocation5 + $0x38] sm:$0xff]
        %vm235 = vcmask 523264
        %v237 = vsel %vm235, %v211, 0
        %v240 = vsel %vm235, %v212, 0
        %v243 = vsel %vm235, %v213, 0
        %v246 = vsel %vm235, %v214, 0
        %v249 = vsel %vm235, %v215, 0
        %v252 = vsel %vm235, %v216, 0
        %v255 = vsel %vm235, %v217, 0
        %v258 = vsel %vm235, %v218, 0
        %v261 = vsel %vm235, %v219, 0
        %v264 = vsel %vm235, %v220, 0
        %v267 = vsel %vm235, %v221, 0
        %v270 = vsel %vm235, %v222, 0
        %v273 = vsel %vm235, %v223, 0
        %v276 = vsel %vm235, %v224, 0
        %v279 = vsel %vm235, %v225, 0
        %v282 = vsel %vm235, %v226, 0
        %284 = vmatpush.msra.mxu0 0.0
        %285 = vmatpush.msra.mxu0 0.0
        %286 = vmatpush.msra.mxu0 0.0
        %287 = vmatpush.msra.mxu0 0.0
        %288 = vmatpush.msra.mxu0 0.0
        %289 = vmatpush.msra.mxu0 0.0
        %290 = vmatpush.msra.mxu0 0.0
        %291 = vmatpush.msra.mxu0 0.0
        %292 = vmatpush.msra.mxu0 %v234
        %293 = vmatpush.msra.mxu0 %v233
        %294 = vmatpush.msra.mxu0 %v232
        %295 = vmatpush.msra.mxu0 %v231
        %296 = vmatpush.msra.mxu0 %v230
        %297 = vmatpush.msra.mxu0 %v229
        %298 = vmatpush.msra.mxu0 %v228
        %299 = vmatpush.msra.mxu0 %v227
        %300 = vmatmul.f32.gmra.mxu0 %v237
        %v301 = vpop.f32.mrf.mxu0
        %v302 = vadd.f32 0.0, %v301
        %303 = vmatmul.f32.gmra.mxu0 %v240
        %v304 = vpop.f32.mrf.mxu0
        %v305 = vadd.f32 0.0, %v304
        %306 = vmatmul.f32.gmra.mxu0 %v243
        %v307 = vpop.f32.mrf.mxu0
        %v308 = vadd.f32 0.0, %v307
        %309 = vmatmul.f32.gmra.mxu0 %v246
        %v310 = vpop.f32.mrf.mxu0
        %v311 = vadd.f32 0.0, %v310
        %312 = vmatmul.f32.gmra.mxu0 %v249
        %v313 = vpop.f32.mrf.mxu0
        %v314 = vadd.f32 0.0, %v313
        %315 = vmatmul.f32.gmra.mxu0 %v252
        %v316 = vpop.f32.mrf.mxu0
        %v317 = vadd.f32 0.0, %v316
        %318 = vmatmul.f32.gmra.mxu0 %v255
        %v319 = vpop.f32.mrf.mxu0
        %v320 = vadd.f32 0.0, %v319
        %321 = vmatmul.f32.gmra.mxu0 %v258
        %v322 = vpop.f32.mrf.mxu0
        %v323 = vadd.f32 0.0, %v322
        %324 = vmatmul.f32.gmra.mxu0 %v261
        %v325 = vpop.f32.mrf.mxu0
        %v326 = vadd.f32 0.0, %v325
        %327 = vmatmul.f32.gmra.mxu0 %v264
        %v328 = vpop.f32.mrf.mxu0
        %v329 = vadd.f32 0.0, %v328
        %330 = vmatmul.f32.gmra.mxu0 %v267
        %v331 = vpop.f32.mrf.mxu0
        %v332 = vadd.f32 0.0, %v331
        %333 = vmatmul.f32.gmra.mxu0 %v270
        %v334 = vpop.f32.mrf.mxu0
        %v335 = vadd.f32 0.0, %v334
        %336 = vmatmul.f32.gmra.mxu0 %v273
        %v337 = vpop.f32.mrf.mxu0
        %v338 = vadd.f32 0.0, %v337
        %339 = vmatmul.f32.gmra.mxu0 %v276
        %v340 = vpop.f32.mrf.mxu0
        %v341 = vadd.f32 0.0, %v340
        %342 = vmatmul.f32.gmra.mxu0 %v279
        %v343 = vpop.f32.mrf.mxu0
        %v344 = vadd.f32 0.0, %v343
        %345 = vmatmul.f32.gmra.mxu0 %v282
        %v346 = vpop.f32.mrf.mxu0
        %v347 = vadd.f32 0.0, %v346
        %348 = vdwg.mxu0
        %s349 = scalar_lea.vmem [#allocation5], 64
        %v350 = vld [vmem:[%s349] sm:$0xff]
        %v351 = vld [vmem:[%s349 + $0x8] sm:$0xff]
        %v352 = vld [vmem:[%s349 + $0x10] sm:$0xff]
        %v353 = vld [vmem:[%s349 + $0x18] sm:$0xff]
        %v354 = vld [vmem:[%s349 + $0x20] sm:$0xff]
        %v355 = vld [vmem:[%s349 + $0x28] sm:$0xff]
        %v356 = vld [vmem:[%s349 + $0x30] sm:$0xff]
        %v357 = vld [vmem:[%s349 + $0x38] sm:$0xff]
        %s358 = scalar_lea.vmem [#allocation5], 128
        %v359 = vld [vmem:[%s358] sm:$0xff]
        %v360 = vld [vmem:[%s358 + $0x8] sm:$0xff]
        %v361 = vld [vmem:[%s358 + $0x10] sm:$0xff]
        %v362 = vld [vmem:[%s358 + $0x18] sm:$0xff]
        %v363 = vld [vmem:[%s358 + $0x20] sm:$0xff]
        %v364 = vld [vmem:[%s358 + $0x28] sm:$0xff]
        %v365 = vld [vmem:[%s358 + $0x30] sm:$0xff]
        %v366 = vld [vmem:[%s358 + $0x38] sm:$0xff]
        %367 = vmatpush.msra.mxu0 0.0
        %368 = vmatpush.msra.mxu0 0.0
        %369 = vmatpush.msra.mxu0 0.0
        %370 = vmatpush.msra.mxu0 0.0
        %371 = vmatpush.msra.mxu0 0.0
        %372 = vmatpush.msra.mxu0 0.0
        %373 = vmatpush.msra.mxu0 0.0
        %374 = vmatpush.msra.mxu0 0.0
        %375 = vmatpush.msra.mxu0 %v366
        %376 = vmatpush.msra.mxu0 %v365
        %377 = vmatpush.msra.mxu0 %v364
        %378 = vmatpush.msra.mxu0 %v363
        %379 = vmatpush.msra.mxu0 %v362
        %380 = vmatpush.msra.mxu0 %v361
        %381 = vmatpush.msra.mxu0 %v360
        %382 = vmatpush.msra.mxu0 %v359
        %383 = vmatmul.f32.gmra.mxu0 %v237
        %v384 = vpop.f32.mrf.mxu0
        %v385 = vadd.f32 0.0, %v384
        %386 = vmatmul.f32.gmra.mxu0 %v240
        %v387 = vpop.f32.mrf.mxu0
        %v388 = vadd.f32 0.0, %v387
        %389 = vmatmul.f32.gmra.mxu0 %v243
        %v390 = vpop.f32.mrf.mxu0
        %v391 = vadd.f32 0.0, %v390
        %392 = vmatmul.f32.gmra.mxu0 %v246
        %v393 = vpop.f32.mrf.mxu0
        %v394 = vadd.f32 0.0, %v393
        %395 = vmatmul.f32.gmra.mxu0 %v249
        %v396 = vpop.f32.mrf.mxu0
        %v397 = vadd.f32 0.0, %v396
        %398 = vmatmul.f32.gmra.mxu0 %v252
        %v399 = vpop.f32.mrf.mxu0
        %v400 = vadd.f32 0.0, %v399
        %401 = vmatmul.f32.gmra.mxu0 %v255
        %v402 = vpop.f32.mrf.mxu0
        %v403 = vadd.f32 0.0, %v402
        %404 = vmatmul.f32.gmra.mxu0 %v258
        %v405 = vpop.f32.mrf.mxu0
        %v406 = vadd.f32 0.0, %v405
        %407 = vmatmul.f32.gmra.mxu0 %v261
        %v408 = vpop.f32.mrf.mxu0
        %v409 = vadd.f32 0.0, %v408
        %410 = vmatmul.f32.gmra.mxu0 %v264
        %v411 = vpop.f32.mrf.mxu0
        %v412 = vadd.f32 0.0, %v411
        %413 = vmatmul.f32.gmra.mxu0 %v267
        %v414 = vpop.f32.mrf.mxu0
        %v415 = vadd.f32 0.0, %v414
        %416 = vmatmul.f32.gmra.mxu0 %v270
        %v417 = vpop.f32.mrf.mxu0
        %v418 = vadd.f32 0.0, %v417
        %419 = vmatmul.f32.gmra.mxu0 %v273
        %v420 = vpop.f32.mrf.mxu0
        %v421 = vadd.f32 0.0, %v420
        %422 = vmatmul.f32.gmra.mxu0 %v276
        %v423 = vpop.f32.mrf.mxu0
        %v424 = vadd.f32 0.0, %v423
        %425 = vmatmul.f32.gmra.mxu0 %v279
        %v426 = vpop.f32.mrf.mxu0
        %v427 = vadd.f32 0.0, %v426
        %428 = vmatmul.f32.gmra.mxu0 %v282
        %v429 = vpop.f32.mrf.mxu0
        %v430 = vadd.f32 0.0, %v429
        %431 = vdwg.mxu0
        %v432 = vlaneseq
        %v433 = vshrl.u32 %v432, 7
        %v434 = vadd.s32 %v433, 8
        %v435 = vadd.s32 %v433, 16
        %v436 = vadd.s32 %v433, 24
        %v437 = vadd.s32 %v433, 32
        %v438 = vadd.s32 %v433, 40
        %v439 = vadd.s32 %v433, 48
        %v440 = vadd.s32 %v433, 56
        %v441 = vadd.s32 %v433, 64
        %v442 = vadd.s32 %v433, 72
        %v443 = vadd.s32 %v433, 80
        %v444 = vadd.s32 %v433, 88
        %v445 = vadd.s32 %v433, 96
        %v446 = vadd.s32 %v433, 104
        %v447 = vadd.s32 %v433, 112
        %v448 = vadd.s32 %v433, 120
        %vm449 = vcmp.lt.s32.totalorder %v433, 0
        %v450 = vsub.s32 0, %v433
        %v451 = vsel %vm449, %v450, %v433
        %v452 = vshrl.u32 %v451, 4
        %v453 = vand.u32 %v451, 15
        %v454 = vsub.s32 0, %v453
        %v455 = vsel %vm449, %v454, %v453
        %vm456 = vcmp.lt.s32.totalorder %v434, 0
        %v457 = vsub.s32 0, %v434
        %v458 = vsel %vm456, %v457, %v434
        %v459 = vshrl.u32 %v458, 4
        %v460 = vand.u32 %v458, 15
        %v461 = vsub.s32 0, %v460
        %v462 = vsel %vm456, %v461, %v460
        %vm463 = vcmp.lt.s32.totalorder %v435, 0
        %v464 = vsub.s32 0, %v435
        %v465 = vsel %vm463, %v464, %v435
        %v466 = vshrl.u32 %v465, 4
        %v467 = vand.u32 %v465, 15
        %v468 = vsub.s32 0, %v467
        %v469 = vsel %vm463, %v468, %v467
        %vm470 = vcmp.lt.s32.totalorder %v436, 0
        %v471 = vsub.s32 0, %v436
        %v472 = vsel %vm470, %v471, %v436
        %v473 = vshrl.u32 %v472, 4
        %v474 = vand.u32 %v472, 15
        %v475 = vsub.s32 0, %v474
        %v476 = vsel %vm470, %v475, %v474
        %vm477 = vcmp.lt.s32.totalorder %v437, 0
        %v478 = vsub.s32 0, %v437
        %v479 = vsel %vm477, %v478, %v437
        %v480 = vshrl.u32 %v479, 4
        %v481 = vand.u32 %v479, 15
        %v482 = vsub.s32 0, %v481
        %v483 = vsel %vm477, %v482, %v481
        %vm484 = vcmp.lt.s32.totalorder %v438, 0
        %v485 = vsub.s32 0, %v438
        %v486 = vsel %vm484, %v485, %v438
        %v487 = vshrl.u32 %v486, 4
        %v488 = vand.u32 %v486, 15
        %v489 = vsub.s32 0, %v488
        %v490 = vsel %vm484, %v489, %v488
        %vm491 = vcmp.lt.s32.totalorder %v439, 0
        %v492 = vsub.s32 0, %v439
        %v493 = vsel %vm491, %v492, %v439
        %v494 = vshrl.u32 %v493, 4
        %v495 = vand.u32 %v493, 15
        %v496 = vsub.s32 0, %v495
        %v497 = vsel %vm491, %v496, %v495
        %vm498 = vcmp.lt.s32.totalorder %v440, 0
        %v499 = vsub.s32 0, %v440
        %v500 = vsel %vm498, %v499, %v440
        %v501 = vshrl.u32 %v500, 4
        %v502 = vand.u32 %v500, 15
        %v503 = vsub.s32 0, %v502
        %v504 = vsel %vm498, %v503, %v502
        %vm505 = vcmp.lt.s32.totalorder %v441, 0
        %v506 = vsub.s32 0, %v441
        %v507 = vsel %vm505, %v506, %v441
        %v508 = vshrl.u32 %v507, 4
        %v509 = vand.u32 %v507, 15
        %v510 = vsub.s32 0, %v509
        %v511 = vsel %vm505, %v510, %v509
        %vm512 = vcmp.lt.s32.totalorder %v442, 0
        %v513 = vsub.s32 0, %v442
        %v514 = vsel %vm512, %v513, %v442
        %v515 = vshrl.u32 %v514, 4
        %v516 = vand.u32 %v514, 15
        %v517 = vsub.s32 0, %v516
        %v518 = vsel %vm512, %v517, %v516
        %vm519 = vcmp.lt.s32.totalorder %v443, 0
        %v520 = vsub.s32 0, %v443
        %v521 = vsel %vm519, %v520, %v443
        %v522 = vshrl.u32 %v521, 4
        %v523 = vand.u32 %v521, 15
        %v524 = vsub.s32 0, %v523
        %v525 = vsel %vm519, %v524, %v523
        %vm526 = vcmp.lt.s32.totalorder %v444, 0
        %v527 = vsub.s32 0, %v444
        %v528 = vsel %vm526, %v527, %v444
        %v529 = vshrl.u32 %v528, 4
        %v530 = vand.u32 %v528, 15
        %v531 = vsub.s32 0, %v530
        %v532 = vsel %vm526, %v531, %v530
        %vm533 = vcmp.lt.s32.totalorder %v445, 0
        %v534 = vsub.s32 0, %v445
        %v535 = vsel %vm533, %v534, %v445
        %v536 = vshrl.u32 %v535, 4
        %v537 = vand.u32 %v535, 15
        %v538 = vsub.s32 0, %v537
        %v539 = vsel %vm533, %v538, %v537
        %vm540 = vcmp.lt.s32.totalorder %v446, 0
        %v541 = vsub.s32 0, %v446
        %v542 = vsel %vm540, %v541, %v446
        %v543 = vshrl.u32 %v542, 4
        %v544 = vand.u32 %v542, 15
        %v545 = vsub.s32 0, %v544
        %v546 = vsel %vm540, %v545, %v544
        %vm547 = vcmp.lt.s32.totalorder %v447, 0
        %v548 = vsub.s32 0, %v447
        %v549 = vsel %vm547, %v548, %v447
        %v550 = vshrl.u32 %v549, 4
        %v551 = vand.u32 %v549, 15
        %v552 = vsub.s32 0, %v551
        %v553 = vsel %vm547, %v552, %v551
        %vm554 = vcmp.lt.s32.totalorder %v448, 0
        %v555 = vsub.s32 0, %v448
        %v556 = vsel %vm554, %v555, %v448
        %v557 = vshrl.u32 %v556, 4
        %v558 = vand.u32 %v556, 15
        %v559 = vsub.s32 0, %v558
        %v560 = vsel %vm554, %v559, %v558
        %vm561 = vcmp.ne.s32.totalorder %v455, 0
        %vm562 = vcmp.ne.s32.totalorder %v462, 0
        %vm563 = vcmp.ne.s32.totalorder %v469, 0
        %vm564 = vcmp.ne.s32.totalorder %v476, 0
        %vm565 = vcmp.ne.s32.totalorder %v483, 0
        %vm566 = vcmp.ne.s32.totalorder %v490, 0
        %vm567 = vcmp.ne.s32.totalorder %v497, 0
        %vm568 = vcmp.ne.s32.totalorder %v504, 0
        %vm569 = vcmp.ne.s32.totalorder %v511, 0
        %vm570 = vcmp.ne.s32.totalorder %v518, 0
        %vm571 = vcmp.ne.s32.totalorder %v525, 0
        %vm572 = vcmp.ne.s32.totalorder %v532, 0
        %vm573 = vcmp.ne.s32.totalorder %v539, 0
        %vm574 = vcmp.ne.s32.totalorder %v546, 0
        %vm575 = vcmp.ne.s32.totalorder %v553, 0
        %vm576 = vcmp.ne.s32.totalorder %v560, 0
        %vm577 = vcmp.lt.s32.totalorder %v455, 0
        %vm578 = vcmp.lt.s32.totalorder %v462, 0
        %vm579 = vcmp.lt.s32.totalorder %v469, 0
        %vm580 = vcmp.lt.s32.totalorder %v476, 0
        %vm581 = vcmp.lt.s32.totalorder %v483, 0
        %vm582 = vcmp.lt.s32.totalorder %v490, 0
        %vm583 = vcmp.lt.s32.totalorder %v497, 0
        %vm584 = vcmp.lt.s32.totalorder %v504, 0
        %vm585 = vcmp.lt.s32.totalorder %v511, 0
        %vm586 = vcmp.lt.s32.totalorder %v518, 0
        %vm587 = vcmp.lt.s32.totalorder %v525, 0
        %vm588 = vcmp.lt.s32.totalorder %v532, 0
        %vm589 = vcmp.lt.s32.totalorder %v539, 0
        %vm590 = vcmp.lt.s32.totalorder %v546, 0
        %vm591 = vcmp.lt.s32.totalorder %v553, 0
        %vm592 = vcmp.lt.s32.totalorder %v560, 0
        %vm593 = vmand %vm577, %vm561
        %vm594 = vmand %vm578, %vm562
        %vm595 = vmand %vm579, %vm563
        %vm596 = vmand %vm580, %vm564
        %vm597 = vmand %vm581, %vm565
        %vm598 = vmand %vm582, %vm566
        %vm599 = vmand %vm583, %vm567
        %vm600 = vmand %vm584, %vm568
        %vm601 = vmand %vm585, %vm569
        %vm602 = vmand %vm586, %vm570
        %vm603 = vmand %vm587, %vm571
        %vm604 = vmand %vm588, %vm572
        %vm605 = vmand %vm589, %vm573
        %vm606 = vmand %vm590, %vm574
        %vm607 = vmand %vm591, %vm575
        %vm608 = vmand %vm592, %vm576
        %v609 = vadd.s32 %v455, 16
        %v610 = vadd.s32 %v462, 16
        %v611 = vadd.s32 %v469, 16
        %v612 = vadd.s32 %v476, 16
        %v613 = vadd.s32 %v483, 16
        %v614 = vadd.s32 %v490, 16
        %v615 = vadd.s32 %v497, 16
        %v616 = vadd.s32 %v504, 16
        %v617 = vadd.s32 %v511, 16
        %v618 = vadd.s32 %v518, 16
        %v619 = vadd.s32 %v525, 16
        %v620 = vadd.s32 %v532, 16
        %v621 = vadd.s32 %v539, 16
        %v622 = vadd.s32 %v546, 16
        %v623 = vadd.s32 %v553, 16
        %v624 = vadd.s32 %v560, 16
        %v625 = vsel %vm593, %v609, %v455
        %v626 = vsel %vm594, %v610, %v462
        %v627 = vsel %vm595, %v611, %v469
        %v628 = vsel %vm596, %v612, %v476
        %v629 = vsel %vm597, %v613, %v483
        %v630 = vsel %vm598, %v614, %v490
        %v631 = vsel %vm599, %v615, %v497
        %v632 = vsel %vm600, %v616, %v504
        %v633 = vsel %vm601, %v617, %v511
        %v634 = vsel %vm602, %v618, %v518
        %v635 = vsel %vm603, %v619, %v525
        %v636 = vsel %vm604, %v620, %v532
        %v637 = vsel %vm605, %v621, %v539
        %v638 = vsel %vm606, %v622, %v546
        %v639 = vsel %vm607, %v623, %v553
        %v640 = vsel %vm608, %v624, %v560
        %v641 = vrot.slane %v302, 7
        %v642 = vrot.slane %v305, 7
        %v643 = vrot.slane %v308, 7
        %v644 = vrot.slane %v311, 7
        %v645 = vrot.slane %v314, 7
        %v646 = vrot.slane %v317, 7
        %v647 = vrot.slane %v320, 7
        %v648 = vrot.slane %v323, 7
        %v649 = vrot.slane %v326, 7
        %v650 = vrot.slane %v329, 7
        %v651 = vrot.slane %v332, 7
        %v652 = vrot.slane %v335, 7
        %v653 = vrot.slane %v338, 7
        %v654 = vrot.slane %v341, 7
        %v655 = vrot.slane %v344, 7
        %v656 = vrot.slane %v347, 7
        %vm657 = vcmp.lt.s32.totalorder %v433, 1
        %v658 = vsel %vm657, %v655, %v656
        %v659 = vsel %vm657, %v654, %v655
        %v660 = vsel %vm657, %v653, %v654
        %v661 = vsel %vm657, %v652, %v653
        %v662 = vsel %vm657, %v651, %v652
        %v663 = vsel %vm657, %v650, %v651
        %v664 = vsel %vm657, %v649, %v650
        %v665 = vsel %vm657, %v648, %v649
        %v666 = vsel %vm657, %v647, %v648
        %v667 = vsel %vm657, %v646, %v647
        %v668 = vsel %vm657, %v645, %v646
        %v669 = vsel %vm657, %v644, %v645
        %v670 = vsel %vm657, %v643, %v644
        %v671 = vsel %vm657, %v642, %v643
        %v672 = vsel %vm657, %v641, %v642
        %v673 = vsel %vm657, %v656, %v641
        %v674 = vrot.slane %v385, 1
        %v675 = vrot.slane %v388, 1
        %v676 = vrot.slane %v391, 1
        %v677 = vrot.slane %v394, 1
        %v678 = vrot.slane %v397, 1
        %v679 = vrot.slane %v400, 1
        %v680 = vrot.slane %v403, 1
        %v681 = vrot.slane %v406, 1
        %v682 = vrot.slane %v409, 1
        %v683 = vrot.slane %v412, 1
        %v684 = vrot.slane %v415, 1
        %v685 = vrot.slane %v418, 1
        %v686 = vrot.slane %v421, 1
        %v687 = vrot.slane %v424, 1
        %v688 = vrot.slane %v427, 1
        %v689 = vrot.slane %v430, 1
        %vm690 = vcmp.lt.s32.totalorder %v433, 7
        %v691 = vsel %vm690, %v688, %v689
        %v692 = vsel %vm690, %v687, %v688
        %v693 = vsel %vm690, %v686, %v687
        %v694 = vsel %vm690, %v685, %v686
        %v695 = vsel %vm690, %v684, %v685
        %v696 = vsel %vm690, %v683, %v684
        %v697 = vsel %vm690, %v682, %v683
        %v698 = vsel %vm690, %v681, %v682
        %v699 = vsel %vm690, %v680, %v681
        %v700 = vsel %vm690, %v679, %v680
        %v701 = vsel %vm690, %v678, %v679
        %v702 = vsel %vm690, %v677, %v678
        %v703 = vsel %vm690, %v676, %v677
        %v704 = vsel %vm690, %v675, %v676
        %v705 = vsel %vm690, %v674, %v675
        %v706 = vsel %vm690, %v689, %v674
        %v707 = vld [vmem:[%s2] sm:$0x1]
        %v709 = vperm.slane %v707, 0
        %711 = vmatpush.msra.mxu0 0.0
        %712 = vmatpush.msra.mxu0 0.0
        %713 = vmatpush.msra.mxu0 0.0
        %714 = vmatpush.msra.mxu0 0.0
        %715 = vmatpush.msra.mxu0 0.0
        %716 = vmatpush.msra.mxu0 0.0
        %717 = vmatpush.msra.mxu0 0.0
        %718 = vmatpush.msra.mxu0 0.0
        %719 = vmatpush.msra.mxu0 %v357
        %720 = vmatpush.msra.mxu0 %v356
        %721 = vmatpush.msra.mxu0 %v355
        %722 = vmatpush.msra.mxu0 %v354
        %723 = vmatpush.msra.mxu0 %v353
        %724 = vmatpush.msra.mxu0 %v352
        %725 = vmatpush.msra.mxu0 %v351
        %726 = vmatpush.msra.mxu0 %v350
        %727 = vmatmul.f32.gmra.mxu0 %v237
        %v728 = vpop.f32.mrf.mxu0
        %v729 = vadd.f32 %v709, %v728
        %730 = vmatmul.f32.gmra.mxu0 %v240
        %v731 = vpop.f32.mrf.mxu0
        %v732 = vadd.f32 %v709, %v731
        %733 = vmatmul.f32.gmra.mxu0 %v243
        %v734 = vpop.f32.mrf.mxu0
        %v735 = vadd.f32 %v709, %v734
        %736 = vmatmul.f32.gmra.mxu0 %v246
        %v737 = vpop.f32.mrf.mxu0
        %v738 = vadd.f32 %v709, %v737
        %739 = vmatmul.f32.gmra.mxu0 %v249
        %v740 = vpop.f32.mrf.mxu0
        %v741 = vadd.f32 %v709, %v740
        %742 = vmatmul.f32.gmra.mxu0 %v252
        %v743 = vpop.f32.mrf.mxu0
        %v744 = vadd.f32 %v709, %v743
        %745 = vmatmul.f32.gmra.mxu0 %v255
        %v746 = vpop.f32.mrf.mxu0
        %v747 = vadd.f32 %v709, %v746
        %748 = vmatmul.f32.gmra.mxu0 %v258
        %v749 = vpop.f32.mrf.mxu0
        %v750 = vadd.f32 %v709, %v749
        %751 = vmatmul.f32.gmra.mxu0 %v261
        %v752 = vpop.f32.mrf.mxu0
        %v753 = vadd.f32 %v709, %v752
        %754 = vmatmul.f32.gmra.mxu0 %v264
        %v755 = vpop.f32.mrf.mxu0
        %v756 = vadd.f32 %v709, %v755
        %757 = vmatmul.f32.gmra.mxu0 %v267
        %v758 = vpop.f32.mrf.mxu0
        %v759 = vadd.f32 %v709, %v758
        %760 = vmatmul.f32.gmra.mxu0 %v270
        %v761 = vpop.f32.mrf.mxu0
        %v762 = vadd.f32 %v709, %v761
        %763 = vmatmul.f32.gmra.mxu0 %v273
        %v764 = vpop.f32.mrf.mxu0
        %v765 = vadd.f32 %v709, %v764
        %766 = vmatmul.f32.gmra.mxu0 %v276
        %v767 = vpop.f32.mrf.mxu0
        %v768 = vadd.f32 %v709, %v767
        %769 = vmatmul.f32.gmra.mxu0 %v279
        %v770 = vpop.f32.mrf.mxu0
        %v771 = vadd.f32 %v709, %v770
        %772 = vmatmul.f32.gmra.mxu0 %v282
        %v773 = vpop.f32.mrf.mxu0
        %v774 = vadd.f32 %v709, %v773
        %775 = vdwg.mxu0
        %vm776 = vcmp.ne.s32.totalorder %v625, 0
        %vm777 = vcmp.ne.s32.totalorder %v626, 0
        %vm778 = vcmp.ne.s32.totalorder %v627, 0
        %vm779 = vcmp.ne.s32.totalorder %v628, 0
        %vm780 = vcmp.ne.s32.totalorder %v629, 0
        %vm781 = vcmp.ne.s32.totalorder %v630, 0
        %vm782 = vcmp.ne.s32.totalorder %v631, 0
        %vm783 = vcmp.ne.s32.totalorder %v632, 0
        %vm784 = vcmp.ne.s32.totalorder %v633, 0
        %vm785 = vcmp.ne.s32.totalorder %v634, 0
        %vm786 = vcmp.ne.s32.totalorder %v635, 0
        %vm787 = vcmp.ne.s32.totalorder %v636, 0
        %vm788 = vcmp.ne.s32.totalorder %v637, 0
        %vm789 = vcmp.ne.s32.totalorder %v638, 0
        %vm790 = vcmp.ne.s32.totalorder %v639, 0
        %vm791 = vcmp.ne.s32.totalorder %v640, 0
        %v792 = vsel %vm776, %v673, 0.0
        %v793 = vsel %vm777, %v672, 0.0
        %v794 = vsel %vm778, %v671, 0.0
        %v795 = vsel %vm779, %v670, 0.0
        %v796 = vsel %vm780, %v669, 0.0
        %v797 = vsel %vm781, %v668, 0.0
        %v798 = vsel %vm782, %v667, 0.0
        %v799 = vsel %vm783, %v666, 0.0
        %v800 = vsel %vm784, %v665, 0.0
        %v801 = vsel %vm785, %v664, 0.0
        %v802 = vsel %vm786, %v663, 0.0
        %v803 = vsel %vm787, %v662, 0.0
        %v804 = vsel %vm788, %v661, 0.0
        %v805 = vsel %vm789, %v660, 0.0
        %v806 = vsel %vm790, %v659, 0.0
        %v807 = vsel %vm791, %v658, 0.0
        %v808 = vadd.f32 %v729, %v792
        %v809 = vadd.f32 %v732, %v793
        %v810 = vadd.f32 %v735, %v794
        %v811 = vadd.f32 %v738, %v795
        %v812 = vadd.f32 %v741, %v796
        %v813 = vadd.f32 %v744, %v797
        %v814 = vadd.f32 %v747, %v798
        %v815 = vadd.f32 %v750, %v799
        %v816 = vadd.f32 %v753, %v800
        %v817 = vadd.f32 %v756, %v801
        %v818 = vadd.f32 %v759, %v802
        %v819 = vadd.f32 %v762, %v803
        %v820 = vadd.f32 %v765, %v804
        %v821 = vadd.f32 %v768, %v805
        %v822 = vadd.f32 %v771, %v806
        %v823 = vadd.f32 %v774, %v807
        %vm824 = vcmp.ne.s32.totalorder %v625, 15
        %vm825 = vcmp.ne.s32.totalorder %v626, 15
        %vm826 = vcmp.ne.s32.totalorder %v627, 15
        %vm827 = vcmp.ne.s32.totalorder %v628, 15
        %vm828 = vcmp.ne.s32.totalorder %v629, 15
        %vm829 = vcmp.ne.s32.totalorder %v630, 15
        %vm830 = vcmp.ne.s32.totalorder %v631, 15
        %vm831 = vcmp.ne.s32.totalorder %v632, 15
        %vm832 = vcmp.ne.s32.totalorder %v633, 15
        %vm833 = vcmp.ne.s32.totalorder %v634, 15
        %vm834 = vcmp.ne.s32.totalorder %v635, 15
        %vm835 = vcmp.ne.s32.totalorder %v636, 15
        %vm836 = vcmp.ne.s32.totalorder %v637, 15
        %vm837 = vcmp.ne.s32.totalorder %v638, 15
        %vm838 = vcmp.ne.s32.totalorder %v639, 15
        %vm839 = vcmp.ne.s32.totalorder %v640, 15
        %v840 = vsel %vm824, %v705, 0.0
        %v841 = vsel %vm825, %v704, 0.0
        %v842 = vsel %vm826, %v703, 0.0
        %v843 = vsel %vm827, %v702, 0.0
        %v844 = vsel %vm828, %v701, 0.0
        %v845 = vsel %vm829, %v700, 0.0
        %v846 = vsel %vm830, %v699, 0.0
        %v847 = vsel %vm831, %v698, 0.0
        %v848 = vsel %vm832, %v697, 0.0
        %v849 = vsel %vm833, %v696, 0.0
        %v850 = vsel %vm834, %v695, 0.0
        %v851 = vsel %vm835, %v694, 0.0
        %v852 = vsel %vm836, %v693, 0.0
        %v853 = vsel %vm837, %v692, 0.0
        %v854 = vsel %vm838, %v691, 0.0
        %v855 = vsel %vm839, %v706, 0.0
        %v856 = vadd.f32 %v808, %v840
        %v857 = vadd.f32 %v809, %v841
        %v858 = vadd.f32 %v810, %v842
        %v859 = vadd.f32 %v811, %v843
        %v860 = vadd.f32 %v812, %v844
        %v861 = vadd.f32 %v813, %v845
        %v862 = vadd.f32 %v814, %v846
        %v863 = vadd.f32 %v815, %v847
        %v864 = vadd.f32 %v816, %v848
        %v865 = vadd.f32 %v817, %v849
        %v866 = vadd.f32 %v818, %v850
        %v867 = vadd.f32 %v819, %v851
        %v868 = vadd.f32 %v820, %v852
        %v869 = vadd.f32 %v821, %v853
        %v870 = vadd.f32 %v822, %v854
        %v871 = vadd.f32 %v823, %v855
        %872 = vst [vmem:[%s208] sm:$0xff] %v856
        %873 = vst [vmem:[%s208 + $0x8] sm:$0xff] %v857
        %874 = vst [vmem:[%s208 + $0x10] sm:$0xff] %v858
        %875 = vst [vmem:[%s208 + $0x18] sm:$0xff] %v859
        %876 = vst [vmem:[%s208 + $0x20] sm:$0xff] %v860
        %877 = vst [vmem:[%s208 + $0x28] sm:$0xff] %v861
        %878 = vst [vmem:[%s208 + $0x30] sm:$0xff] %v862
        %879 = vst [vmem:[%s208 + $0x38] sm:$0xff] %v863
        %880 = vst [vmem:[%s208 + $0x40] sm:$0xff] %v864
        %881 = vst [vmem:[%s208 + $0x48] sm:$0xff] %v865
        %882 = vst [vmem:[%s208 + $0x50] sm:$0xff] %v866
        %883 = vst [vmem:[%s208 + $0x58] sm:$0xff] %v867
        %884 = vst [vmem:[%s208 + $0x60] sm:$0xff] %v868
        %885 = vst [vmem:[%s208 + $0x68] sm:$0xff] %v869
        %886 = vst [vmem:[%s208 + $0x70] sm:$0xff] %v870
        %887 = vst [vmem:[%s208 + $0x78] sm:$0xff] %v871
        %s888 = sand.u32 %s97, 1
        %s889 = scalar_lea.sflag [#allocation4], %s888
        %s890 = sand.u32 %s97, 1
        %s891 = smul.addr %s890, 128
        %s892 = scalar_lea.vmem [#allocation7], %s891
        // Predicated region
        $region41: #{tpu_custom_call.1} parent=31 // pred_check
          %p893 = pneg %p107
        $region42: #{tpu_custom_call.1} parent=31 // pred_check_branch
          %895 = sbr.rel (%p893) target = $region44
        $region43: #{tpu_custom_call.1} parent=31 // pred_region
          %s896 = smul.u32 16, %s21
          %898 = vsyncadd %s889, 0
          %s899 = smul.addr %s896, 8
          %s900 = scalar_lea.hbm %s3, %s899
          %s901 = sshll.u32 %s892, 4
          %s902 = int_to_ptr.vmem [resolvable:$true] %s901
          %s903 = sshll.u32 %s900, 4
          %s904 = int_to_ptr.hbm [resolvable:$true] %s903
          %909 = dma.vmem_to_hbm [thread:$0]  %s902, 2048, %s904, %s889, 128, 128, 8
        $region44: #{tpu_custom_call.1} parent=31 // pred_fallthru
          _
      $region32: #{tpu_custom_call.1} parent=5 // pred_fallthru
        _
      %p910 = scmp.le.s32.totalorder 2, %s16
      // Predicated region
      $region45: #{tpu_custom_call.1} parent=5 // pred_check
        %p911 = pneg %p910
      $region46: #{tpu_custom_call.1} parent=5 // pred_check_branch
        %913 = sbr.rel (%p911) target = $region48
      $region47: #{tpu_custom_call.1} parent=5 // pred_region
        %s914 = ssub.s32 %s16, 2
        // Predicated region
        $region49: #{tpu_custom_call.1} parent=47 // pred_check
          %p915 = pneg %p113
        $region50: #{tpu_custom_call.1} parent=47 // pred_check_branch
          %917 = sbr.rel (%p915) target = $region52
        $region51: #{tpu_custom_call.1} parent=47 // pred_region
          %s918 = sand.u32 %s98, 1
          %s919 = scalar_lea.sflag [#allocation4], %s918
          %s920 = sand.u32 %s98, 1
          %s921 = smul.addr %s920, 128
          %s922 = scalar_lea.vmem [#allocation7], %s921
          %924 = dma.done %s919, 2048
        $region52: #{tpu_custom_call.1} parent=47 // pred_fallthru
          _
      $region48: #{tpu_custom_call.1} parent=5 // pred_fallthru
        _
    $region6: #{tpu_custom_call.1} parent=1 // loop_footer
      %s20 = sadd.s32 1, %s16
    $region7: #{tpu_custom_call.1} parent=1 // loop_footer_branch
      %15 = sbr.rel target = $region3
    $region8: #{tpu_custom_call.1} parent=1 // loop_exit
      _
    %925 = vsyncpa [#allocation3], 1
    %s926 = scalar_lea.sflag [#allocation3], 1
    %927 = vsyncpa %s926, 1
    %928 = vsyncpa [#allocation6], 1
    %929 = vsyncpa [#allocation4], 1
    %s930 = scalar_lea.sflag [#allocation4], 1
    %931 = vsyncpa %s930, 1

</llo_original>
